<compile_context>
chip_gen: v5e
topology: v5e:2x2
jax: 0.10.0
libtpu: 0.0.40
codegen_flags: <defaults>
</compile_context>

<pallas_src>
import math
import functools

import jax
import jax.numpy as jnp
from jax.experimental import pallas as pl
from jax.experimental.pallas import tpu as pltpu


def _channel_kernel(scale_ref, x_ref, h_ref, noise_ref, out_ref, *, L, N, pad):
    """One (TB, N) batch tile resident in VMEM.

    scale_ref : (1,)   f32  SMEM   (1/sqrt(2)) / sqrt(snr_linear)
    x_ref     : (TB,N) f32  VMEM   input signal tile (lane-dense, unpadded)
    h_ref     : (TB,L) f32  VMEM   per-sample channel taps
    noise_ref : (TB,N) f32  VMEM   standard-normal noise tile
    out_ref   : (TB,N) f32  VMEM   channel output tile
    """
    x = x_ref[...]
    h = h_ref[...]
    tb = x.shape[0]

    # x_power[b] = ||x[b]||_2 / sqrt(N): aligned read, cross-lane reduce (XLU),
    # sqrt on the EUP.
    x_power = jnp.sqrt(jnp.sum(x * x, axis=1, keepdims=True) * (1.0 / N))

    lane = jax.lax.broadcasted_iota(jnp.int32, (tb, N), 1)

    # Depthwise 'same'-padded cross-correlation without a padded buffer:
    #   y[b, t] = sum_l x[b, t + l - pad] * h[b, l]   (zero where t+l-pad is OOB)
    # Each tap = static lane shift + ONE-SIDED boundary mask (perf feedback):
    # for s < 0 the upper bound is always satisfied, for s > 0 the lower bound is.
    def tap(l):
        s = l - pad                                   # static shift for this tap
        if s == 0:
            shifted = x
        elif s < 0:
            # x[:, t + s]: valid iff t >= -s.
            shifted = jnp.where(lane >= (-s), jnp.roll(x, -s, axis=1), 0.0)
        else:
            # x[:, t + s]: valid iff t < N - s.
            shifted = jnp.where(lane < (N - s), jnp.roll(x, -s, axis=1), 0.0)
        return shifted * h[:, l:l + 1]

    acc = tap(0)                                      # init with tap 0 (saves one add)
    for l in range(1, L):
        acc = acc + tap(l)

    out_ref[...] = acc + noise_ref[...] * (scale_ref[0] * x_power)


def _round_up(v, m):
    return ((v + m - 1) // m) * m


def _pick_batch_tile(B, block_b):
    """Batch tile: full batch for tiny B, otherwise a multiple-of-8 tile that
    (a) keeps >=2 grid steps for v7x megacore sharding and (b) is large enough
    to amortize the ~0.35us per-grid-step pipeline overhead."""
    if B <= 8:
        return B                                       # single full-extent block
    if B <= block_b:
        return min(block_b, _round_up(pl.cdiv(B, 2), 8))
    return block_b


def multipath_channel(x, h, snr_db, noise_key=None, noise=None, *, block_b=2048):
    """Apply the multipath channel.

    x: (B, N) f32 signal, h: (B, L) f32 per-sample taps (L odd), snr_db scalar.
    noise: optional (B, N) standard-normal draw; generated from noise_key if None.
    Returns (B, N) f32: grouped-conv1d('same') output + scaled Gaussian noise.
    """
    B, N = x.shape
    L = h.shape[1]
    if L % 2 != 1:
        # F.conv1d with pad=(L-1)//2 and even L gives N-1 outputs; keep the
        # lane-dense N==N_out fast path and be explicit about the restriction.
        raise ValueError("multipath_channel kernel requires an odd tap count L "
                         "(so the 'same'-padded conv output length equals N).")
    pad = (L - 1) // 2

    # Additive noise drawn in the wrapper (same distribution as torch.randn in
    # the reference module); the 1/sqrt(2)/sqrt(snr) scale stays in-kernel.
    if noise is None:
        if noise_key is None:
            noise_key = jax.random.PRNGKey(0)
        noise = jax.random.normal(noise_key, (B, N), dtype=jnp.float32)

    # Runtime scalar (SMEM): changing snr_db does not retrace or recompile.
    snr_lin = 10.0 ** (jnp.asarray(snr_db, jnp.float32) / 10.0)
    noise_scale = ((1.0 / math.sqrt(2.0)) / jnp.sqrt(snr_lin)).astype(jnp.float32).reshape(1)

    TB = _pick_batch_tile(B, block_b)
    grid = (pl.cdiv(B, TB),)

    kernel = functools.partial(_channel_kernel, L=L, N=N, pad=pad)

    return pl.pallas_call(
        kernel,
        out_shape=jax.ShapeDtypeStruct((B, N), jnp.float32),
        grid_spec=pltpu.PrefetchScalarGridSpec(
            num_scalar_prefetch=0,
            grid=grid,
            in_specs=[
                pl.BlockSpec(memory_space=pltpu.MemorySpace.SMEM),   # noise scale (1,) f32
                pl.BlockSpec((TB, N), lambda i: (i, 0)),             # x tile
                pl.BlockSpec((TB, L), lambda i: (i, 0)),             # h tile
                pl.BlockSpec((TB, N), lambda i: (i, 0)),             # noise tile
            ],
            out_specs=pl.BlockSpec((TB, N), lambda i: (i, 0)),
        ),
        compiler_params=pltpu.CompilerParams(
            dimension_semantics=("parallel",),
            # v5e's default scoped VMEM is only 16 MiB; the double-buffered
            # x/noise/out tiles plus elementwise temporaries need more at TB=2048.
            vmem_limit_bytes=48 * 1024 * 1024),
    )(noise_scale, x, h, noise)


if __name__ == "__main__":
    B, N, L = 4, 128, 5            # small shapes consistent with the module
    key = jax.random.PRNGKey(0)
    kx, kh, kn1, kn2 = jax.random.split(key, 4)

    # Power-delay profile and per-sample taps (sample_h): (1/sqrt(2))*randn*PDP
    PDP = jnp.exp(-0.5 * jnp.arange(L, dtype=jnp.float32))
    x = jax.random.normal(kx, (B, N), dtype=jnp.float32)
    h = (1.0 / math.sqrt(2.0)) * jax.random.normal(kh, (B, L), dtype=jnp.float32) * PDP[None, :]

    # Pure-JAX reference for the deterministic (channel-conv) part.
    pad = (L - 1) // 2
    xpad = jnp.pad(x, ((0, 0), (pad, pad)))
    ref = jnp.zeros((B, N), jnp.float32)
    for l in range(L):
        ref = ref + xpad[:, l:l + N] * h[:, l:l + 1]

    # 1) Very high SNR: additive noise term ~1e-10, so the kernel output must
    #    match the deterministic conv reference (validates roll + one-sided mask).
    out_hi = jax.block_until_ready(multipath_channel(x, h, snr_db=200.0, noise_key=kn1))
    assert out_hi.shape == (B, N)
    assert jnp.allclose(out_hi, ref, rtol=1e-4, atol=1e-4), "conv path mismatch vs reference"

    # 2) Realistic SNR: residual (out - conv) must be ~N(0, 1) after dividing by
    #    the per-row noise scale (1/sqrt(2))/sqrt(snr) * x_power.
    snr_db = 10.0
    out = jax.block_until_ready(multipath_channel(x, h, snr_db=snr_db, noise_key=kn2))
    assert out.shape == (B, N)
    assert bool(jnp.all(jnp.isfinite(out))), "non-finite output"
    x_power = jnp.linalg.norm(x, axis=1) / math.sqrt(N)
    nscale = (1.0 / math.sqrt(2.0)) / math.sqrt(10.0 ** (snr_db / 10.0)) * x_power[:, None]
    zhat = (out - ref) / nscale
    assert abs(float(jnp.mean(zhat))) < 0.25, "noise mean off"
    assert abs(float(jnp.std(zhat)) - 1.0) < 0.25, "noise std off"

    print("KERNEL_OK")
</pallas_src>

<mosaic_0001>
module attributes {stable_mosaic.version = 11 : i64} {
  func.func @_channel_kernel(%arg0: i32, %arg1: memref<1xf32, #tpu.memory_space<smem>>, %arg2: memref<4x128xf32, #tpu.memory_space<vmem>>, %arg3: memref<4x5xf32, #tpu.memory_space<vmem>>, %arg4: memref<4x128xf32, #tpu.memory_space<vmem>>, %arg5: memref<4x128xf32, #tpu.memory_space<vmem>>) attributes {dimension_semantics = [#tpu.dimension_semantics<parallel>], iteration_bounds = array<i64: 1>, scalar_prefetch = 0 : i64, scratch_operands = 0 : i64, tpu.core_type = #tpu.core_type<tc>, window_params = [{transform_indices = @transform_0, window_bounds = array<i64: 1>}, {transform_indices = @transform_1, window_bounds = array<i64: 4, 128>}, {transform_indices = @transform_2, window_bounds = array<i64: 4, 5>}, {transform_indices = @transform_3, window_bounds = array<i64: 4, 128>}, {transform_indices = @transform_4, window_bounds = array<i64: 4, 128>}]} {
    %c0 = arith.constant 0 : index
    %c0_0 = arith.constant 0 : index
    %0 = vector.load %arg2[%c0, %c0_0] : memref<4x128xf32, #tpu.memory_space<vmem>>, vector<4x128xf32>
    %c0_1 = arith.constant 0 : index
    %c0_2 = arith.constant 0 : index
    %1 = vector.load %arg3[%c0_1, %c0_2] : memref<4x5xf32, #tpu.memory_space<vmem>>, vector<4x5xf32>
    %2 = arith.mulf %0, %0 : vector<4x128xf32>
    %cst = arith.constant dense<0.000000e+00> : vector<4xf32>
    %3 = vector.multi_reduction <add>, %2, %cst [1] : vector<4x128xf32> to vector<4xf32>
    %4 = vector.shape_cast %3 : vector<4xf32> to vector<4x1xf32>
    %cst_3 = arith.constant 7.812500e-03 : f32
    %5 = vector.broadcast %cst_3 : f32 to vector<4x1xf32>
    %6 = arith.mulf %4, %5 : vector<4x1xf32>
    %7 = math.sqrt %6 : vector<4x1xf32>
    %8 = tpu.iota {dimensions = array<i32: 1>} : vector<4x128xi32>
    %c2_i32 = arith.constant 2 : i32
    %9 = vector.broadcast %c2_i32 : i32 to vector<4x128xi32>
    %10 = arith.cmpi sge, %8, %9 : vector<4x128xi32>
    %11 = vector.extract_strided_slice %0 {offsets = [0, 126], sizes = [4, 2], strides = [1, 1]} : vector<4x128xf32> to vector<4x2xf32>
    %12 = vector.extract_strided_slice %0 {offsets = [0, 0], sizes = [4, 126], strides = [1, 1]} : vector<4x128xf32> to vector<4x126xf32>
    %13 = tpu.concatenate %11, %12 in 1 : vector<4x2xf32>, vector<4x126xf32> -> vector<4x128xf32>
    %cst_4 = arith.constant 0.000000e+00 : f32
    %14 = vector.broadcast %cst_4 : f32 to vector<4x128xf32>
    %15 = arith.select %10, %13, %14 : vector<4x128xi1>, vector<4x128xf32>
    %16 = vector.extract_strided_slice %1 {offsets = [0, 0], sizes = [4, 1], strides = [1, 1]} : vector<4x5xf32> to vector<4x1xf32>
    %17 = vector.broadcast %16 : vector<4x1xf32> to vector<4x128xf32>
    %18 = arith.mulf %15, %17 : vector<4x128xf32>
    %c1_i32 = arith.constant 1 : i32
    %19 = vector.broadcast %c1_i32 : i32 to vector<4x128xi32>
    %20 = arith.cmpi sge, %8, %19 : vector<4x128xi32>
    %21 = vector.extract_strided_slice %0 {offsets = [0, 127], sizes = [4, 1], strides = [1, 1]} : vector<4x128xf32> to vector<4x1xf32>
    %22 = vector.extract_strided_slice %0 {offsets = [0, 0], sizes = [4, 127], strides = [1, 1]} : vector<4x128xf32> to vector<4x127xf32>
    %23 = tpu.concatenate %21, %22 in 1 : vector<4x1xf32>, vector<4x127xf32> -> vector<4x128xf32>
    %cst_5 = arith.constant 0.000000e+00 : f32
    %24 = vector.broadcast %cst_5 : f32 to vector<4x128xf32>
    %25 = arith.select %20, %23, %24 : vector<4x128xi1>, vector<4x128xf32>
    %26 = vector.extract_strided_slice %1 {offsets = [0, 1], sizes = [4, 1], strides = [1, 1]} : vector<4x5xf32> to vector<4x1xf32>
    %27 = vector.broadcast %26 : vector<4x1xf32> to vector<4x128xf32>
    %28 = arith.mulf %25, %27 : vector<4x128xf32>
    %29 = arith.addf %18, %28 : vector<4x128xf32>
    %30 = vector.extract_strided_slice %1 {offsets = [0, 2], sizes = [4, 1], strides = [1, 1]} : vector<4x5xf32> to vector<4x1xf32>
    %31 = vector.broadcast %30 : vector<4x1xf32> to vector<4x128xf32>
    %32 = arith.mulf %0, %31 : vector<4x128xf32>
    %33 = arith.addf %29, %32 : vector<4x128xf32>
    %c127_i32 = arith.constant 127 : i32
    %34 = vector.broadcast %c127_i32 : i32 to vector<4x128xi32>
    %35 = arith.cmpi slt, %8, %34 : vector<4x128xi32>
    %36 = vector.extract_strided_slice %0 {offsets = [0, 1], sizes = [4, 127], strides = [1, 1]} : vector<4x128xf32> to vector<4x127xf32>
    %37 = vector.extract_strided_slice %0 {offsets = [0, 0], sizes = [4, 1], strides = [1, 1]} : vector<4x128xf32> to vector<4x1xf32>
    %38 = tpu.concatenate %36, %37 in 1 : vector<4x127xf32>, vector<4x1xf32> -> vector<4x128xf32>
    %cst_6 = arith.constant 0.000000e+00 : f32
    %39 = vector.broadcast %cst_6 : f32 to vector<4x128xf32>
    %40 = arith.select %35, %38, %39 : vector<4x128xi1>, vector<4x128xf32>
    %41 = vector.extract_strided_slice %1 {offsets = [0, 3], sizes = [4, 1], strides = [1, 1]} : vector<4x5xf32> to vector<4x1xf32>
    %42 = vector.broadcast %41 : vector<4x1xf32> to vector<4x128xf32>
    %43 = arith.mulf %40, %42 : vector<4x128xf32>
    %44 = arith.addf %33, %43 : vector<4x128xf32>
    %c126_i32 = arith.constant 126 : i32
    %45 = vector.broadcast %c126_i32 : i32 to vector<4x128xi32>
    %46 = arith.cmpi slt, %8, %45 : vector<4x128xi32>
    %47 = vector.extract_strided_slice %0 {offsets = [0, 2], sizes = [4, 126], strides = [1, 1]} : vector<4x128xf32> to vector<4x126xf32>
    %48 = vector.extract_strided_slice %0 {offsets = [0, 0], sizes = [4, 2], strides = [1, 1]} : vector<4x128xf32> to vector<4x2xf32>
    %49 = tpu.concatenate %47, %48 in 1 : vector<4x126xf32>, vector<4x2xf32> -> vector<4x128xf32>
    %cst_7 = arith.constant 0.000000e+00 : f32
    %50 = vector.broadcast %cst_7 : f32 to vector<4x128xf32>
    %51 = arith.select %46, %49, %50 : vector<4x128xi1>, vector<4x128xf32>
    %52 = vector.extract_strided_slice %1 {offsets = [0, 4], sizes = [4, 1], strides = [1, 1]} : vector<4x5xf32> to vector<4x1xf32>
    %53 = vector.broadcast %52 : vector<4x1xf32> to vector<4x128xf32>
    %54 = arith.mulf %51, %53 : vector<4x128xf32>
    %55 = arith.addf %44, %54 : vector<4x128xf32>
    %c0_8 = arith.constant 0 : index
    %c0_9 = arith.constant 0 : index
    %56 = vector.load %arg4[%c0_8, %c0_9] : memref<4x128xf32, #tpu.memory_space<vmem>>, vector<4x128xf32>
    %c0_10 = arith.constant 0 : index
    %57 = memref.load %arg1[%c0_10] : memref<1xf32, #tpu.memory_space<smem>>
    %58 = vector.broadcast %57 : f32 to vector<4x1xf32>
    %59 = arith.mulf %58, %7 : vector<4x1xf32>
    %60 = vector.broadcast %59 : vector<4x1xf32> to vector<4x128xf32>
    %61 = arith.mulf %56, %60 : vector<4x128xf32>
    %62 = arith.addf %55, %61 : vector<4x128xf32>
    %c0_11 = arith.constant 0 : index
    %c0_12 = arith.constant 0 : index
    %63 = vector.load %arg5[%c0_11, %c0_12] : memref<4x128xf32, #tpu.memory_space<vmem>>, vector<4x128xf32>
    tpu.vector_store %arg5[%c0_11, %c0_12], %62 {strides = array<i32>} : memref<4x128xf32, #tpu.memory_space<vmem>>, vector<4x128xf32>,
    return
  }
  func.func @transform_0(%arg0: i32) -> i32 {
    %c0_i32 = arith.constant 0 : i32
    %c0_i32_0 = arith.constant 0 : i32
    return %c0_i32 : i32
  }
  func.func @transform_1(%arg0: i32) -> (i32, i32) {
    %c0_i32 = arith.constant 0 : i32
    %c0_i32_0 = arith.constant 0 : i32
    return %arg0, %c0_i32 : i32, i32
  }
  func.func @transform_2(%arg0: i32) -> (i32, i32) {
    %c0_i32 = arith.constant 0 : i32
    %c0_i32_0 = arith.constant 0 : i32
    return %arg0, %c0_i32 : i32, i32
  }
  func.func @transform_3(%arg0: i32) -> (i32, i32) {
    %c0_i32 = arith.constant 0 : i32
    %c0_i32_0 = arith.constant 0 : i32
    return %arg0, %c0_i32 : i32, i32
  }
  func.func @transform_4(%arg0: i32) -> (i32, i32) {
    %c0_i32 = arith.constant 0 : i32
    %c0_i32_0 = arith.constant 0 : i32
    return %arg0, %c0_i32 : i32, i32
  }
}

</mosaic_0001>

<llo_original>
// kernel: tpu_custom_call.1
$region0: #{tpu_custom_call.1}
  #allocation0 [shape = 'u32[]', space=smem, size = 0x4, offset = 0x4, fixed_abs, tag = 'smem constant byte address 0x4 - core index']
  #allocation1 [shape = 'u32[72,128]{1,0:T(1,128)}', space=vmem, size = 0x9000, scoped, tag = 'internal scratch']
  #allocation2 [shape = 'f32[1]{0:T(128)S(6)}', space=smem, size = 0x200, scoped, tag = 'scoped memory for tpu_custom_call.1']
  %s0 = inlined_call_operand.<no memory space> [shape: f32[1], index: 0, kind: input, shape index: {}]
  %s1 = inlined_call_operand.hbm [shape: f32[4,128], index: 1, kind: input, shape index: {}]
  %s2 = inlined_call_operand.hbm [shape: f32[4,5], index: 2, kind: input, shape index: {}]
  %s3 = inlined_call_operand.hbm [shape: f32[4,128], index: 3, kind: input, shape index: {}]
  %s4 = inlined_call_operand.hbm [shape: f32[4,128], index: 4, kind: output, shape index: {}]
  %s5 = sld [smem:[#allocation0]]
  $region38: #{tpu_custom_call.1} parent=0
    _
  %s7 = ssub.s32 1, %s5
  %s8 = scalar_select 0, %s7, %s5
  %9 = sst [smem:[#allocation2]] %s0
  $region1: #{tpu_custom_call.1} parent=0
    #allocation3 [shape = 'u8[2048]{0}', space=vmem, size = 0x800, scoped, tag = 'input window, operand 1, single buffered']
    #allocation4 [shape = 's32[1]{0}', space=sflag, size = 0x4, scoped, tag = 'scoped memory for tpu_custom_call.1']
    #allocation5 [shape = 's32[1]{0}', space=sflag, size = 0x4, scoped, tag = 'scoped memory for tpu_custom_call.1']
    #allocation6 [shape = 'u8[2048]{0}', space=vmem, size = 0x800, scoped, tag = 'input window, operand 2, single buffered']
    #allocation7 [shape = 's32[1]{0}', space=sflag, size = 0x4, scoped, tag = 'scoped memory for tpu_custom_call.1']
    #allocation8 [shape = 'u8[2048]{0}', space=vmem, size = 0x800, scoped, tag = 'input window, operand 3, single buffered']
    #allocation9 [shape = 'u8[2048]{0}', space=vmem, size = 0x800, scoped, tag = 'output window, operand 0, single buffered']
    %10 = vsyncpa [#allocation4], 0
    %11 = vsyncpa [#allocation7], 0
    %12 = vsyncpa [#allocation5], 0
    // Predicated region
    $region2: #{tpu_custom_call.1} parent=1 // pred_check
      _
    $region3: #{tpu_custom_call.1} parent=1 // pred_check_branch
      %14 = sbr.rel (0) target = $region5
    $region4: #{tpu_custom_call.1} parent=1 // pred_region
      _
    $region5: #{tpu_custom_call.1} parent=1 // pred_fallthru
      _
    // Predicated region
    $region6: #{tpu_custom_call.1} parent=1 // pred_check
      _
    $region7: #{tpu_custom_call.1} parent=1 // pred_check_branch
      %16 = sbr.rel (0) target = $region9
    $region8: #{tpu_custom_call.1} parent=1 // pred_region
      %18 = vsyncadd [#allocation4], 0
      %s20 = sshll.u32 %s1, 4
      %s21 = int_to_ptr.hbm [resolvable:$true] %s20
      %s22 = sshll.u32 [#allocation3], 4
      %s23 = int_to_ptr.vmem [resolvable:$true] %s22
      %25 = dma.hbm_to_vmem [thread:$0]  %s21, 64, %s23, [#allocation4]
    $region9: #{tpu_custom_call.1} parent=1 // pred_fallthru
      _
    // Predicated region
    $region10: #{tpu_custom_call.1} parent=1 // pred_check
      _
    $region11: #{tpu_custom_call.1} parent=1 // pred_check_branch
      %27 = sbr.rel (0) target = $region13
    $region12: #{tpu_custom_call.1} parent=1 // pred_region
      %29 = vsyncadd [#allocation7], 0
      %s31 = sshll.u32 %s2, 4
      %s32 = int_to_ptr.hbm [resolvable:$true] %s31
      %s33 = sshll.u32 [#allocation6], 4
      %s34 = int_to_ptr.vmem [resolvable:$true] %s33
      %36 = dma.hbm_to_vmem [thread:$0]  %s32, 64, %s34, [#allocation7]
    $region13: #{tpu_custom_call.1} parent=1 // pred_fallthru
      _
    // Predicated region
    $region14: #{tpu_custom_call.1} parent=1 // pred_check
      _
    $region15: #{tpu_custom_call.1} parent=1 // pred_check_branch
      %38 = sbr.rel (0) target = $region17
    $region16: #{tpu_custom_call.1} parent=1 // pred_region
      %40 = vsyncadd [#allocation7], 0
      %s42 = sshll.u32 %s3, 4
      %s43 = int_to_ptr.hbm [resolvable:$true] %s42
      %s44 = sshll.u32 [#allocation8], 4
      %s45 = int_to_ptr.vmem [resolvable:$true] %s44
      %47 = dma.hbm_to_vmem [thread:$0]  %s43, 64, %s45, [#allocation7]
    $region17: #{tpu_custom_call.1} parent=1 // pred_fallthru
      _
    // Predicated region
    $region18: #{tpu_custom_call.1} parent=1 // pred_check
      _
    $region19: #{tpu_custom_call.1} parent=1 // pred_check_branch
      %49 = sbr.rel (0) target = $region21
    $region20: #{tpu_custom_call.1} parent=1 // pred_region
      %51 = dma.done [#allocation4], 64
    $region21: #{tpu_custom_call.1} parent=1 // pred_fallthru
      _
    // Predicated region
    $region22: #{tpu_custom_call.1} parent=1 // pred_check
      _
    $region23: #{tpu_custom_call.1} parent=1 // pred_check_branch
      %53 = sbr.rel (0) target = $region25
    $region24: #{tpu_custom_call.1} parent=1 // pred_region
      %55 = dma.done [#allocation7], 64
    $region25: #{tpu_custom_call.1} parent=1 // pred_fallthru
      _
    // Predicated region
    $region26: #{tpu_custom_call.1} parent=1 // pred_check
      _
    $region27: #{tpu_custom_call.1} parent=1 // pred_check_branch
      %57 = sbr.rel (0) target = $region29
    $region28: #{tpu_custom_call.1} parent=1 // pred_region
      %59 = dma.done [#allocation7], 64
    $region29: #{tpu_custom_call.1} parent=1 // pred_fallthru
      _
    %v60 = vld [vmem:[#allocation3] sm:$0xf]
    %v61 = vld [vmem:[#allocation6] sm:$0xf]
    %v62 = vmul.f32 %v60, %v60
    %vm63 = vcmask 1043456
    %v64 = vsel %vm63, %v62, 0.0
    %65 = vadd.xlane.f32.xlu0 %v64
    %v66 = vpop.xlane.xlu0 %65
    %v67 = vmul.f32 %v66, 0.0078125
    %v68 = vrsqrt.pop %v67
    %v69 = vmul.f32 %v68, %v67
    %v70 = vmul.f32 %v69, %v68
    %v71 = vmul.f32 0.5, %v70
    %v72 = vsub.f32 1.5, %v71
    %v73 = vmul.f32 %v68, %v72
    %v74 = vmul.f32 %v67, %v73
    %vm75 = vcmp.eq.f32.partialorder %v67, inf
    %v76 = vsel %vm75, %v67, %v74
    %vm77 = vcmp.eq.f32.partialorder %v67, 0.0
    %v78 = vand.u32 %v67, 2147483648
    %v79 = vsel %vm77, %v78, %v76
    %v80 = vlaneseq
    %v81 = vand.u32 %v80, 127
    %vm82 = vcmp.ge.s32.totalorder %v81, 2
    %84 = vrot.lane.b32.xlu0 %v60, 2
    %v85 = vpop.permute.xlu0 %84
    %v87 = vsel %vm82, %v85, 0.0
    %89 = vset.pattern.permute.xlu0 0
    %90 = vperm.xlu0 %89, %v61
    %v91 = vpop.permute.xlu0 %90
    %v93 = vmul.f32 %v87, %v91
    %vm94 = vcmp.ge.s32.totalorder %v81, 1
    %95 = vrot.lane.b32.xlu0 %v60, 1
    %v96 = vpop.permute.xlu0 %95
    %v98 = vsel %vm94, %v96, 0.0
    %99 = vset.pattern.permute.xlu0 1
    %100 = vperm.xlu0 %99, %v61
    %v101 = vpop.permute.xlu0 %100
    %v103 = vmul.f32 %v98, %v101
    %v104 = vadd.f32 %v93, %v103
    %105 = vset.pattern.permute.xlu0 2
    %106 = vperm.xlu0 %105, %v61
    %v107 = vpop.permute.xlu0 %106
    %v109 = vmul.f32 %v60, %v107
    %v110 = vadd.f32 %v104, %v109
    %vm111 = vcmp.lt.s32.totalorder %v81, 127
    %112 = vrot.lane.b32.xlu0 %v60, 127
    %v113 = vpop.permute.xlu0 %112
    %v115 = vsel %vm111, %v113, 0.0
    %116 = vset.pattern.permute.xlu0 3
    %117 = vperm.xlu0 %116, %v61
    %v118 = vpop.permute.xlu0 %117
    %v120 = vmul.f32 %v115, %v118
    %v121 = vadd.f32 %v110, %v120
    %vm122 = vcmp.lt.s32.totalorder %v81, 126
    %123 = vrot.lane.b32.xlu0 %v60, 126
    %v124 = vpop.permute.xlu0 %123
    %v126 = vsel %vm122, %v124, 0.0
    %127 = vset.pattern.permute.xlu0 4
    %128 = vperm.xlu0 %127, %v61
    %v129 = vpop.permute.xlu0 %128
    %v131 = vmul.f32 %v126, %v129
    %v132 = vadd.f32 %v121, %v131
    %v133 = vld [vmem:[#allocation8] sm:$0xf]
    %s134 = sld [smem:[#allocation2]]
    %v135 = vstv %s134
    %v136 = vmul.f32 %v135, %v79
    %v137 = vmul.f32 %v133, %v136
    %v138 = vadd.f32 %v132, %v137
    %139 = vst [vmem:[#allocation9] sm:$0xf] %v138
    // Predicated region
    $region30: #{tpu_custom_call.1} parent=1 // pred_check
      _
    $region31: #{tpu_custom_call.1} parent=1 // pred_check_branch
      %141 = sbr.rel (0) target = $region33
    $region32: #{tpu_custom_call.1} parent=1 // pred_region
      %143 = vsyncadd [#allocation5], 0
      %s145 = sshll.u32 [#allocation9], 4
      %s146 = int_to_ptr.vmem [resolvable:$true] %s145
      %s147 = sshll.u32 %s4, 4
      %s148 = int_to_ptr.hbm [resolvable:$true] %s147
      %150 = dma.vmem_to_hbm [thread:$0]  %s146, 64, %s148, [#allocation5]
    $region33: #{tpu_custom_call.1} parent=1 // pred_fallthru
      _
    // Predicated region
    $region34: #{tpu_custom_call.1} parent=1 // pred_check
      _
    $region35: #{tpu_custom_call.1} parent=1 // pred_check_branch
      %152 = sbr.rel (0) target = $region37
    $region36: #{tpu_custom_call.1} parent=1 // pred_region
      %154 = dma.done [#allocation5], 64
    $region37: #{tpu_custom_call.1} parent=1 // pred_fallthru
      _
    %155 = vsyncpa [#allocation4], 1
    %156 = vsyncpa [#allocation7], 1
    %157 = vsyncpa [#allocation5], 1

</llo_original>
